<compile_context>
chip_gen: v7x
topology: tpu7x:2x2x1
jax: 0.10.0
libtpu: 0.0.40
codegen_flags: <defaults>
</compile_context>

<pallas_src>
import functools

import jax
import jax.numpy as jnp
from jax.experimental import pallas as pl
from jax.experimental.pallas import tpu as pltpu


F_PAD = 128  # lane-dense feature slab (vreg lane width)


# ---------------------------------------------------------------------------
# Fused Pallas kernel: 3 GCN layers + masked log_softmax, all VMEM-resident
# ---------------------------------------------------------------------------
def fused_gcn_kernel(x_ref, adj_ref, w_ref, b_ref, o_ref, *, nfeat, nclass):
    adj = adj_ref[...]                     # (N, N)      f32
    x = x_ref[...]                         # (N, nfeat)  f32, unpadded

    # ---- layer 0: contract over the real K = nfeat (no host-side padding) ----
    agg = jnp.dot(adj, x, preferred_element_type=jnp.float32)            # (N, nfeat)
    h = (jnp.dot(agg, w_ref[0, :nfeat, :],
                 preferred_element_type=jnp.float32)
         + jnp.dot(x, w_ref[0, F_PAD:F_PAD + nfeat, :],
                   preferred_element_type=jnp.float32)
         + b_ref[0])                                                     # (N, F_PAD)

    # ---- layers 1..2: lane-dense, two K=128 matmuls per layer (no concat) ----
    for l in (1, 2):
        agg = jnp.dot(adj, h, preferred_element_type=jnp.float32)        # (N, F_PAD)
        h = (jnp.dot(agg, w_ref[l, :F_PAD, :],
                     preferred_element_type=jnp.float32)
             + jnp.dot(h, w_ref[l, F_PAD:, :],
                       preferred_element_type=jnp.float32)
             + b_ref[l])
        # z-gate, bias and eval-mode BN are folded into w_ref / b_ref;
        # activation = identity (GCNModel_fsp default: lambda x: x).

    # ---- log_softmax over the first `nclass` lanes (padded lanes masked) ----
    col = jax.lax.broadcasted_iota(jnp.int32, h.shape, 1)
    s_masked = jnp.where(col < nclass, h, -jnp.inf)       # single select
    m = jnp.max(s_masked, axis=1, keepdims=True)
    lse = jnp.log(jnp.sum(jnp.exp(s_masked - m), axis=1, keepdims=True))  # exp(-inf)=0
    o_ref[...] = (h - m - lse).astype(o_ref.dtype)


def gcn_model_fsp_forward(x, adj, wstack, bstack, nfeat, nclass):
    n = x.shape[0]
    vmem = pl.BlockSpec(memory_space=pltpu.MemorySpace.VMEM)

    # Advisory cost estimate for XLA's scheduler.
    flops = (2 * n * n * nfeat + 2 * 2 * n * nfeat * F_PAD            # layer 0
             + 2 * (2 * n * n * F_PAD + 2 * 2 * n * F_PAD * F_PAD))   # layers 1..2
    bytes_accessed = 4 * (x.size + adj.size + wstack.size + bstack.size + n * F_PAD)

    out = pl.pallas_call(
        functools.partial(fused_gcn_kernel, nfeat=nfeat, nclass=nclass),
        out_shape=jax.ShapeDtypeStruct((n, F_PAD), jnp.float32),
        in_specs=[vmem] * 4,
        out_specs=vmem,
        cost_estimate=pl.CostEstimate(
            flops=flops, transcendentals=n * F_PAD, bytes_accessed=bytes_accessed),
    )(x, adj, wstack, bstack)
    return out[:, :nclass]


# ---------------------------------------------------------------------------
# Parameter construction (mirrors GraphConvolutionBS shapes) + folding/packing
# ---------------------------------------------------------------------------
def make_layer_params(key, fin, fout):
    k = jax.random.split(key, 6)
    stdv = 1.0 / jnp.sqrt(fout)
    w = jax.random.uniform(k[0], (fin, fout), jnp.float32, -stdv, stdv)
    ws = jax.random.uniform(k[1], (fin, fout), jnp.float32, -stdv, stdv)
    bias = jax.random.uniform(k[2], (1, fout), jnp.float32, -stdv, stdv)
    # BatchNorm1d (eval mode) parameters
    gamma = 1.0 + 0.05 * jax.random.normal(k[3], (1, fout), jnp.float32)
    beta = 0.05 * jax.random.normal(k[4], (1, fout), jnp.float32)
    run_mean = 0.05 * jax.random.normal(k[5], (1, fout), jnp.float32)
    run_var = jnp.ones((1, fout), jnp.float32)
    eps = 1e-5
    scale = gamma / jnp.sqrt(run_var + eps)
    shift = beta - run_mean * scale
    z = jnp.ones((1, fin), jnp.float32)          # self.z[i] = ones(layer_sizes[i])
    return {"w": w, "ws": ws, "bias": bias, "scale": scale, "shift": shift, "z": z}


def fold_layer(p):
    """Fold z-gate + eval-mode BN into the weights, pad to lane-dense 128 slabs,
    stack [W'; Ws'] along the contraction axis."""
    fin, fout = p["w"].shape
    zc = p["z"].reshape(fin, 1)
    w_f = zc * p["w"] * p["scale"]                    # (x*z)@W, then *scale (BN)
    ws_f = zc * p["ws"] * p["scale"]
    b_f = p["bias"] * p["scale"] + p["shift"]

    wcat = (jnp.zeros((2 * F_PAD, F_PAD), jnp.float32)
            .at[:fin, :fout].set(w_f)
            .at[F_PAD:F_PAD + fin, :fout].set(ws_f))
    bias = jnp.zeros((1, F_PAD), jnp.float32).at[:, :fout].set(b_f)
    return wcat, bias


def pack_params(params):
    folded = [fold_layer(p) for p in params]
    wstack = jnp.stack([w for w, _ in folded])        # (3, 2*F_PAD, F_PAD)
    bstack = jnp.stack([b for _, b in folded])        # (3, 1, F_PAD)
    return wstack, bstack


# ---------------------------------------------------------------------------
# Pure-JAX reference (unfused, unfolded) for correctness check
# ---------------------------------------------------------------------------
def reference_forward(x, adj, params):
    for p in params:
        xz = x * p["z"]
        y = adj @ (xz @ p["w"]) + xz @ p["ws"] + p["bias"]
        x = y * p["scale"] + p["shift"]
    m = jnp.max(x, axis=1, keepdims=True)
    s = x - m
    return s - jnp.log(jnp.sum(jnp.exp(s), axis=1, keepdims=True))


if __name__ == "__main__":
    key = jax.random.PRNGKey(0)
    k_x, k_adj, k1, k2, k3 = jax.random.split(key, 5)

    # small shapes consistent with the module: N nodes, nfeat -> nhid -> nhid -> nclass
    N, nfeat, nhid, nclass = 32, 16, 32, 8

    x = jax.random.normal(k_x, (N, nfeat), jnp.float32)

    # deterministic row-normalized adjacency with self loops
    a = (jax.random.uniform(k_adj, (N, N)) > 0.7).astype(jnp.float32)
    a = jnp.maximum(a, a.T) + jnp.eye(N, dtype=jnp.float32)
    adj = a / jnp.sum(a, axis=1, keepdims=True)

    params = [
        make_layer_params(k1, nfeat, nhid),   # ingc   (GraphConvolutionBS)
        make_layer_params(k2, nhid, nhid),    # midlayer[0] (MultiLayerGCNBlock, nbaselayer=1)
        make_layer_params(k3, nhid, nclass),  # outgc  (GraphConvolutionBS)
    ]
    wstack, bstack = pack_params(params)

    out = gcn_model_fsp_forward(x, adj, wstack, bstack, nfeat, nclass)
    out = jax.block_until_ready(out)

    ref = reference_forward(x, adj, params)
    assert out.shape == (N, nclass)
    assert jnp.allclose(out, ref, atol=1e-4, rtol=1e-4), "mismatch vs reference"

    print("KERNEL_OK")
</pallas_src>

<mosaic_0001>
module attributes {stable_mosaic.version = 11 : i64} {
  func.func @fused_gcn_kernel(%arg0: memref<32x16xf32, #tpu.memory_space<vmem>>, %arg1: memref<32x32xf32, #tpu.memory_space<vmem>>, %arg2: memref<3x256x128xf32, #tpu.memory_space<vmem>>, %arg3: memref<3x1x128xf32, #tpu.memory_space<vmem>>, %arg4: memref<32x128xf32, #tpu.memory_space<vmem>>) attributes {dimension_semantics = [], scalar_prefetch = 0 : i64, scratch_operands = 0 : i64, tpu.core_type = #tpu.core_type<tc>} {
    %c0 = arith.constant 0 : index
    %c0_0 = arith.constant 0 : index
    %0 = vector.load %arg1[%c0, %c0_0] : memref<32x32xf32, #tpu.memory_space<vmem>>, vector<32x32xf32>
    %c0_1 = arith.constant 0 : index
    %c0_2 = arith.constant 0 : index
    %1 = vector.load %arg0[%c0_1, %c0_2] : memref<32x16xf32, #tpu.memory_space<vmem>>, vector<32x16xf32>
    %cst = arith.constant dense<0.000000e+00> : vector<32x16xf32>
    %2 = tpu.matmul %0, %1, %cst {dimension_numbers = #tpu.dot_dimension_numbers<[1], [0], [0], [1], [0, 0, 1, 1], [], []>} : vector<32x32xf32>, vector<32x16xf32>, vector<32x16xf32> -> vector<32x16xf32>
    %c0_3 = arith.constant 0 : index
    %c0_4 = arith.constant 0 : index
    %c0_5 = arith.constant 0 : index
    %3 = vector.load %arg2[%c0_3, %c0_4, %c0_5] : memref<3x256x128xf32, #tpu.memory_space<vmem>>, vector<1x16x128xf32>
    %4 = vector.shape_cast %3 : vector<1x16x128xf32> to vector<16x128xf32>
    %cst_6 = arith.constant dense<0.000000e+00> : vector<32x128xf32>
    %5 = tpu.matmul %2, %4, %cst_6 {dimension_numbers = #tpu.dot_dimension_numbers<[1], [0], [0], [1], [0, 0, 1, 1], [], []>} : vector<32x16xf32>, vector<16x128xf32>, vector<32x128xf32> -> vector<32x128xf32>
    %c0_7 = arith.constant 0 : index
    %c128 = arith.constant 128 : index
    %c0_8 = arith.constant 0 : index
    %6 = vector.load %arg2[%c0_7, %c128, %c0_8] : memref<3x256x128xf32, #tpu.memory_space<vmem>>, vector<1x16x128xf32>
    %7 = vector.shape_cast %6 : vector<1x16x128xf32> to vector<16x128xf32>
    %cst_9 = arith.constant dense<0.000000e+00> : vector<32x128xf32>
    %8 = tpu.matmul %1, %7, %cst_9 {dimension_numbers = #tpu.dot_dimension_numbers<[1], [0], [0], [1], [0, 0, 1, 1], [], []>} : vector<32x16xf32>, vector<16x128xf32>, vector<32x128xf32> -> vector<32x128xf32>
    %9 = arith.addf %5, %8 : vector<32x128xf32>
    %c0_10 = arith.constant 0 : index
    %c0_11 = arith.constant 0 : index
    %c0_12 = arith.constant 0 : index
    %10 = vector.load %arg3[%c0_10, %c0_11, %c0_12] : memref<3x1x128xf32, #tpu.memory_space<vmem>>, vector<1x1x128xf32>
    %11 = vector.shape_cast %10 : vector<1x1x128xf32> to vector<1x128xf32>
    %12 = vector.broadcast %11 : vector<1x128xf32> to vector<32x128xf32>
    %13 = arith.addf %9, %12 : vector<32x128xf32>
    %cst_13 = arith.constant dense<0.000000e+00> : vector<32x128xf32>
    %14 = tpu.matmul %0, %13, %cst_13 {dimension_numbers = #tpu.dot_dimension_numbers<[1], [0], [0], [1], [0, 0, 1, 1], [], []>} : vector<32x32xf32>, vector<32x128xf32>, vector<32x128xf32> -> vector<32x128xf32>
    %c1 = arith.constant 1 : index
    %c0_14 = arith.constant 0 : index
    %c0_15 = arith.constant 0 : index
    %15 = vector.load %arg2[%c1, %c0_14, %c0_15] : memref<3x256x128xf32, #tpu.memory_space<vmem>>, vector<1x128x128xf32>
    %16 = vector.shape_cast %15 : vector<1x128x128xf32> to vector<128x128xf32>
    %cst_16 = arith.constant dense<0.000000e+00> : vector<32x128xf32>
    %17 = tpu.matmul %14, %16, %cst_16 {dimension_numbers = #tpu.dot_dimension_numbers<[1], [0], [0], [1], [0, 0, 1, 1], [], []>} : vector<32x128xf32>, vector<128x128xf32>, vector<32x128xf32> -> vector<32x128xf32>
    %c1_17 = arith.constant 1 : index
    %c128_18 = arith.constant 128 : index
    %c0_19 = arith.constant 0 : index
    %18 = vector.load %arg2[%c1_17, %c128_18, %c0_19] : memref<3x256x128xf32, #tpu.memory_space<vmem>>, vector<1x128x128xf32>
    %19 = vector.shape_cast %18 : vector<1x128x128xf32> to vector<128x128xf32>
    %cst_20 = arith.constant dense<0.000000e+00> : vector<32x128xf32>
    %20 = tpu.matmul %13, %19, %cst_20 {dimension_numbers = #tpu.dot_dimension_numbers<[1], [0], [0], [1], [0, 0, 1, 1], [], []>} : vector<32x128xf32>, vector<128x128xf32>, vector<32x128xf32> -> vector<32x128xf32>
    %21 = arith.addf %17, %20 : vector<32x128xf32>
    %c1_21 = arith.constant 1 : index
    %c0_22 = arith.constant 0 : index
    %c0_23 = arith.constant 0 : index
    %22 = vector.load %arg3[%c1_21, %c0_22, %c0_23] : memref<3x1x128xf32, #tpu.memory_space<vmem>>, vector<1x1x128xf32>
    %23 = vector.shape_cast %22 : vector<1x1x128xf32> to vector<1x128xf32>
    %24 = vector.broadcast %23 : vector<1x128xf32> to vector<32x128xf32>
    %25 = arith.addf %21, %24 : vector<32x128xf32>
    %cst_24 = arith.constant dense<0.000000e+00> : vector<32x128xf32>
    %26 = tpu.matmul %0, %25, %cst_24 {dimension_numbers = #tpu.dot_dimension_numbers<[1], [0], [0], [1], [0, 0, 1, 1], [], []>} : vector<32x32xf32>, vector<32x128xf32>, vector<32x128xf32> -> vector<32x128xf32>
    %c2 = arith.constant 2 : index
    %c0_25 = arith.constant 0 : index
    %c0_26 = arith.constant 0 : index
    %27 = vector.load %arg2[%c2, %c0_25, %c0_26] : memref<3x256x128xf32, #tpu.memory_space<vmem>>, vector<1x128x128xf32>
    %28 = vector.shape_cast %27 : vector<1x128x128xf32> to vector<128x128xf32>
    %cst_27 = arith.constant dense<0.000000e+00> : vector<32x128xf32>
    %29 = tpu.matmul %26, %28, %cst_27 {dimension_numbers = #tpu.dot_dimension_numbers<[1], [0], [0], [1], [0, 0, 1, 1], [], []>} : vector<32x128xf32>, vector<128x128xf32>, vector<32x128xf32> -> vector<32x128xf32>
    %c2_28 = arith.constant 2 : index
    %c128_29 = arith.constant 128 : index
    %c0_30 = arith.constant 0 : index
    %30 = vector.load %arg2[%c2_28, %c128_29, %c0_30] : memref<3x256x128xf32, #tpu.memory_space<vmem>>, vector<1x128x128xf32>
    %31 = vector.shape_cast %30 : vector<1x128x128xf32> to vector<128x128xf32>
    %cst_31 = arith.constant dense<0.000000e+00> : vector<32x128xf32>
    %32 = tpu.matmul %25, %31, %cst_31 {dimension_numbers = #tpu.dot_dimension_numbers<[1], [0], [0], [1], [0, 0, 1, 1], [], []>} : vector<32x128xf32>, vector<128x128xf32>, vector<32x128xf32> -> vector<32x128xf32>
    %33 = arith.addf %29, %32 : vector<32x128xf32>
    %c2_32 = arith.constant 2 : index
    %c0_33 = arith.constant 0 : index
    %c0_34 = arith.constant 0 : index
    %34 = vector.load %arg3[%c2_32, %c0_33, %c0_34] : memref<3x1x128xf32, #tpu.memory_space<vmem>>, vector<1x1x128xf32>
    %35 = vector.shape_cast %34 : vector<1x1x128xf32> to vector<1x128xf32>
    %36 = vector.broadcast %35 : vector<1x128xf32> to vector<32x128xf32>
    %37 = arith.addf %33, %36 : vector<32x128xf32>
    %38 = tpu.iota {dimensions = array<i32: 1>} : vector<32x128xi32>
    %c8_i32 = arith.constant 8 : i32
    %39 = vector.broadcast %c8_i32 : i32 to vector<32x128xi32>
    %40 = arith.cmpi slt, %38, %39 : vector<32x128xi32>
    %cst_35 = arith.constant 0xFF800000 : f32
    %41 = vector.broadcast %cst_35 : f32 to vector<32x128xf32>
    %42 = arith.select %40, %37, %41 : vector<32x128xi1>, vector<32x128xf32>
    %cst_36 = arith.constant dense<0xFF800000> : vector<32xf32>
    %43 = vector.multi_reduction <maximumf>, %42, %cst_36 [1] : vector<32x128xf32> to vector<32xf32>
    %44 = vector.shape_cast %43 : vector<32xf32> to vector<32x1xf32>
    %45 = vector.broadcast %44 : vector<32x1xf32> to vector<32x128xf32>
    %46 = arith.subf %42, %45 : vector<32x128xf32>
    %47 = math.exp %46 : vector<32x128xf32>
    %cst_37 = arith.constant dense<0.000000e+00> : vector<32xf32>
    %48 = vector.multi_reduction <add>, %47, %cst_37 [1] : vector<32x128xf32> to vector<32xf32>
    %49 = vector.shape_cast %48 : vector<32xf32> to vector<32x1xf32>
    %50 = math.log %49 : vector<32x1xf32>
    %51 = vector.broadcast %44 : vector<32x1xf32> to vector<32x128xf32>
    %52 = arith.subf %37, %51 : vector<32x128xf32>
    %53 = vector.broadcast %50 : vector<32x1xf32> to vector<32x128xf32>
    %54 = arith.subf %52, %53 : vector<32x128xf32>
    %c0_38 = arith.constant 0 : index
    %c0_39 = arith.constant 0 : index
    %55 = vector.load %arg4[%c0_38, %c0_39] : memref<32x128xf32, #tpu.memory_space<vmem>>, vector<32x128xf32>
    tpu.vector_store %arg4[%c0_38, %c0_39], %54 {strides = array<i32>} : memref<32x128xf32, #tpu.memory_space<vmem>>, vector<32x128xf32>,
    return
  }
}

</mosaic_0001>

<llo_original>
// kernel: tpu_custom_call.1
$region0: #{tpu_custom_call.1}
  #allocation0 [shape = 'u32[]', space=smem, size = 0x4, offset = 0x4, fixed_abs, tag = 'smem constant byte address 0x4 - core index']
  #allocation1 [shape = 'u32[144,128]{1,0:T(1,128)}', space=vmem, size = 0x12000, scoped, tag = 'internal scratch']
  %s0 = inlined_call_operand.vmem [shape: f32[32,16], index: 0, kind: input, shape index: {}]
  %s1 = inlined_call_operand.vmem [shape: f32[32,32], index: 1, kind: input, shape index: {}]
  %s2 = inlined_call_operand.hbm [shape: f32[3,256,128], index: 2, kind: input, shape index: {}]
  %s3 = inlined_call_operand.vmem [shape: f32[3,1,128], index: 3, kind: input, shape index: {}]
  %s4 = inlined_call_operand.hbm [shape: f32[32,128], index: 4, kind: output, shape index: {}]
  %s5 = sld [smem:[#allocation0]]
  $region30: #{tpu_custom_call.1} parent=0
    _
  %s7 = ssub.s32 1, %s5
  %s8 = scalar_select 0, %s7, %s5
  $region1: #{tpu_custom_call.1} parent=0
    #allocation2 [shape = 'u8[393216]{0}', space=vmem, size = 0x60000, scoped, tag = 'input window, operand 2, single buffered']
    #allocation3 [shape = 's32[1]{0}', space=sflag, size = 0x4, scoped, tag = 'scoped memory for tpu_custom_call.1']
    #allocation4 [shape = 's32[1]{0}', space=sflag, size = 0x4, scoped, tag = 'scoped memory for tpu_custom_call.1']
    #allocation5 [shape = 'u8[16384]{0}', space=vmem, size = 0x4000, scoped, tag = 'output window, operand 0, single buffered']
    %9 = vsyncpa [#allocation3], 0
    %10 = vsyncpa [#allocation4], 0
    // Predicated region
    $region2: #{tpu_custom_call.1} parent=1 // pred_check
      _
    $region3: #{tpu_custom_call.1} parent=1 // pred_check_branch
      %12 = sbr.rel (0) target = $region5
    $region4: #{tpu_custom_call.1} parent=1 // pred_region
      _
    $region5: #{tpu_custom_call.1} parent=1 // pred_fallthru
      _
    // Predicated region
    $region6: #{tpu_custom_call.1} parent=1 // pred_check
      _
    $region7: #{tpu_custom_call.1} parent=1 // pred_check_branch
      %14 = sbr.rel (0) target = $region9
    $region8: #{tpu_custom_call.1} parent=1 // pred_region
      _
    $region9: #{tpu_custom_call.1} parent=1 // pred_fallthru
      _
    // Predicated region
    $region10: #{tpu_custom_call.1} parent=1 // pred_check
      _
    $region11: #{tpu_custom_call.1} parent=1 // pred_check_branch
      %16 = sbr.rel (0) target = $region13
    $region12: #{tpu_custom_call.1} parent=1 // pred_region
      %s18 = ssub.s32 12288, 12288
      %19 = vsyncadd [#allocation3], %s18
      %s20 = sshll.u32 [#allocation2], 4
      %s21 = int_to_ptr.vmem [resolvable:$true] %s20
      %26 = dma.hbm_to_vmem [thread:$0]  %s2, 12288, %s21, [#allocation3], 128, 128, 8
    $region13: #{tpu_custom_call.1} parent=1 // pred_fallthru
      _
    // Predicated region
    $region14: #{tpu_custom_call.1} parent=1 // pred_check
      _
    $region15: #{tpu_custom_call.1} parent=1 // pred_check_branch
      %28 = sbr.rel (0) target = $region17
    $region16: #{tpu_custom_call.1} parent=1 // pred_region
      _
    $region17: #{tpu_custom_call.1} parent=1 // pred_fallthru
      _
    // Predicated region
    $region18: #{tpu_custom_call.1} parent=1 // pred_check
      _
    $region19: #{tpu_custom_call.1} parent=1 // pred_check_branch
      %30 = sbr.rel (0) target = $region21
    $region20: #{tpu_custom_call.1} parent=1 // pred_region
      %31 = dma.done [#allocation3], 12288
    $region21: #{tpu_custom_call.1} parent=1 // pred_fallthru
      _
    %v32 = vld [vmem:[%s1] sm:$0xff]
    %v33 = vld [vmem:[%s1 + $0x8] sm:$0xff]
    %v34 = vld [vmem:[%s1 + $0x10] sm:$0xff]
    %v35 = vld [vmem:[%s1 + $0x18] sm:$0xff]
    %v36 = vld [vmem:[%s0] sm:$0xff]
    %v37 = vld [vmem:[%s0 + $0x8] sm:$0xff]
    %v38 = vld [vmem:[%s0 + $0x10] sm:$0xff]
    %v39 = vld [vmem:[%s0 + $0x18] sm:$0xff]
    %vm40 = vcmask 261120
    %v42 = vsel %vm40, %v32, 0
    %v45 = vsel %vm40, %v33, 0
    %v48 = vsel %vm40, %v34, 0
    %v51 = vsel %vm40, %v35, 0
    %53 = vmatprep.subr.mxu0 0.0
    %54 = vmatpush1.msra.mxu0 %v36
    %55 = vmatprep.subr.mxu0 0.0
    %56 = vmatpush1.msra.mxu0 %v37
    %57 = vmatprep.subr.mxu0 0.0
    %58 = vmatpush1.msra.mxu0 %v38
    %59 = vmatprep.subr.mxu0 0.0
    %60 = vmatpush1.msra.mxu0 %v39
    %61 = vmatprep.subr.mxu0 0.0
    %62 = vmatpush1.msra.mxu0 0.0
    %63 = vmatprep.subr.mxu0 0.0
    %64 = vmatpush1.msra.mxu0 0.0
    %65 = vmatprep.subr.mxu0 0.0
    %66 = vmatpush1.msra.mxu0 0.0
    %67 = vmatprep.subr.mxu0 0.0
    %68 = vmatpush1.msra.mxu0 0.0
    %69 = vmatprep.subr.mxu0 0.0
    %70 = vmatpush1.msra.mxu0 0.0
    %71 = vmatprep.subr.mxu0 0.0
    %72 = vmatpush1.msra.mxu0 0.0
    %73 = vmatprep.subr.mxu0 0.0
    %74 = vmatpush1.msra.mxu0 0.0
    %75 = vmatprep.subr.mxu0 0.0
    %76 = vmatpush1.msra.mxu0 0.0
    %77 = vmatprep.subr.mxu0 0.0
    %78 = vmatpush1.msra.mxu0 0.0
    %79 = vmatprep.subr.mxu0 0.0
    %80 = vmatpush1.msra.mxu0 0.0
    %81 = vmatprep.subr.mxu0 0.0
    %82 = vmatpush1.msra.mxu0 0.0
    %83 = vmatprep.subr.mxu0 0.0
    %84 = vmatpush1.msra.mxu0 0.0
    %85 = vmatprep.subr.mxu0 0.0
    %86 = vmatpush1.msra.mxu0 0.0
    %87 = vmatprep.subr.mxu0 0.0
    %88 = vmatpush1.msra.mxu0 0.0
    %89 = vmatprep.subr.mxu0 0.0
    %90 = vmatpush1.msra.mxu0 0.0
    %91 = vmatprep.subr.mxu0 0.0
    %92 = vmatpush1.msra.mxu0 0.0
    %93 = vmatprep.subr.mxu0 0.0
    %94 = vmatpush1.msra.mxu0 0.0
    %95 = vmatprep.subr.mxu0 0.0
    %96 = vmatpush1.msra.mxu0 0.0
    %97 = vmatprep.subr.mxu0 0.0
    %98 = vmatpush1.msra.mxu0 0.0
    %99 = vmatprep.subr.mxu0 0.0
    %100 = vmatpush1.msra.mxu0 0.0
    %101 = vmatprep.subr.mxu0 0.0
    %102 = vmatpush1.msra.mxu0 0.0
    %103 = vmatprep.subr.mxu0 0.0
    %104 = vmatpush1.msra.mxu0 0.0
    %105 = vmatprep.subr.mxu0 0.0
    %106 = vmatpush1.msra.mxu0 0.0
    %107 = vmatprep.subr.mxu0 0.0
    %108 = vmatpush1.msra.mxu0 0.0
    %109 = vmatprep.subr.mxu0 0.0
    %110 = vmatpush1.msra.mxu0 0.0
    %111 = vmatprep.subr.mxu0 0.0
    %112 = vmatpush1.msra.mxu0 0.0
    %113 = vmatprep.subr.mxu0 0.0
    %114 = vmatpush1.msra.mxu0 0.0
    %115 = vmatprep.subr.mxu0 0.0
    %116 = vmatpush1.msra.mxu0 0.0
    %117 = vmatprep.mubr.f32.mxu0 0.0
    %118 = vmatmul.mubr.f32.gmra.mrb[0].mxu0 %v42
    %v119 = vpop.f32.mrb[0].mxu0
    %v120 = vadd.f32 0.0, %v119
    %v121 = vpop.f32.mrb[0].mxu0
    %122 = vmatprep.mubr.f32.mxu0 0.0
    %123 = vmatmul.mubr.f32.gmra.mrb[0].mxu0 %v45
    %v124 = vpop.f32.mrb[0].mxu0
    %v125 = vadd.f32 0.0, %v124
    %v126 = vpop.f32.mrb[0].mxu0
    %127 = vmatprep.mubr.f32.mxu0 0.0
    %128 = vmatmul.mubr.f32.gmra.mrb[0].mxu0 %v48
    %v129 = vpop.f32.mrb[0].mxu0
    %v130 = vadd.f32 0.0, %v129
    %v131 = vpop.f32.mrb[0].mxu0
    %132 = vmatprep.mubr.f32.mxu0 0.0
    %133 = vmatmul.mubr.f32.gmra.mrb[0].mxu0 %v51
    %v134 = vpop.f32.mrb[0].mxu0
    %v135 = vadd.f32 0.0, %v134
    %v136 = vpop.f32.mrb[0].mxu0
    %137 = vdwg.mxu0
    %v138 = vld [vmem:[#allocation2] sm:$0xff]
    %v139 = vld [vmem:[#allocation2 + $0x8] sm:$0xff]
    %v140 = vld [vmem:[#allocation2 + $0x80] sm:$0xff]
    %v141 = vld [vmem:[#allocation2 + $0x88] sm:$0xff]
    %vm142 = vcmask 130048
    %v144 = vsel %vm142, %v36, 0
    %v147 = vsel %vm142, %v37, 0
    %v150 = vsel %vm142, %v38, 0
    %v153 = vsel %vm142, %v39, 0
    %155 = vmatprep.subr.mxu0 0.0
    %156 = vmatpush1.msra.mxu0 %v140
    %157 = vmatprep.subr.mxu0 0.0
    %158 = vmatpush1.msra.mxu0 %v141
    %159 = vmatprep.subr.mxu0 0.0
    %160 = vmatpush1.msra.mxu0 0.0
    %161 = vmatprep.subr.mxu0 0.0
    %162 = vmatpush1.msra.mxu0 0.0
    %163 = vmatprep.subr.mxu0 0.0
    %164 = vmatpush1.msra.mxu0 0.0
    %165 = vmatprep.subr.mxu0 0.0
    %166 = vmatpush1.msra.mxu0 0.0
    %167 = vmatprep.subr.mxu0 0.0
    %168 = vmatpush1.msra.mxu0 0.0
    %169 = vmatprep.subr.mxu0 0.0
    %170 = vmatpush1.msra.mxu0 0.0
    %171 = vmatprep.subr.mxu0 0.0
    %172 = vmatpush1.msra.mxu0 0.0
    %173 = vmatprep.subr.mxu0 0.0
    %174 = vmatpush1.msra.mxu0 0.0
    %175 = vmatprep.subr.mxu0 0.0
    %176 = vmatpush1.msra.mxu0 0.0
    %177 = vmatprep.subr.mxu0 0.0
    %178 = vmatpush1.msra.mxu0 0.0
    %179 = vmatprep.subr.mxu0 0.0
    %180 = vmatpush1.msra.mxu0 0.0
    %181 = vmatprep.subr.mxu0 0.0
    %182 = vmatpush1.msra.mxu0 0.0
    %183 = vmatprep.subr.mxu0 0.0
    %184 = vmatpush1.msra.mxu0 0.0
    %185 = vmatprep.subr.mxu0 0.0
    %186 = vmatpush1.msra.mxu0 0.0
    %187 = vmatprep.subr.mxu0 0.0
    %188 = vmatpush1.msra.mxu0 0.0
    %189 = vmatprep.subr.mxu0 0.0
    %190 = vmatpush1.msra.mxu0 0.0
    %191 = vmatprep.subr.mxu0 0.0
    %192 = vmatpush1.msra.mxu0 0.0
    %193 = vmatprep.subr.mxu0 0.0
    %194 = vmatpush1.msra.mxu0 0.0
    %195 = vmatprep.subr.mxu0 0.0
    %196 = vmatpush1.msra.mxu0 0.0
    %197 = vmatprep.subr.mxu0 0.0
    %198 = vmatpush1.msra.mxu0 0.0
    %199 = vmatprep.subr.mxu0 0.0
    %200 = vmatpush1.msra.mxu0 0.0
    %201 = vmatprep.subr.mxu0 0.0
    %202 = vmatpush1.msra.mxu0 0.0
    %203 = vmatprep.subr.mxu0 0.0
    %204 = vmatpush1.msra.mxu0 0.0
    %205 = vmatprep.subr.mxu0 0.0
    %206 = vmatpush1.msra.mxu0 0.0
    %207 = vmatprep.subr.mxu0 0.0
    %208 = vmatpush1.msra.mxu0 0.0
    %209 = vmatprep.subr.mxu0 0.0
    %210 = vmatpush1.msra.mxu0 0.0
    %211 = vmatprep.subr.mxu0 0.0
    %212 = vmatpush1.msra.mxu0 0.0
    %213 = vmatprep.subr.mxu0 0.0
    %214 = vmatpush1.msra.mxu0 0.0
    %215 = vmatprep.subr.mxu0 0.0
    %216 = vmatpush1.msra.mxu0 0.0
    %217 = vmatprep.subr.mxu0 0.0
    %218 = vmatpush1.msra.mxu0 0.0
    %219 = vmatprep.mubr.f32.mxu0 0.0
    %220 = vmatmul.mubr.f32.gmra.mrb[0].mxu0 %v144
    %v221 = vpop.f32.mrb[0].mxu0
    %v222 = vadd.f32 0.0, %v221
    %v223 = vpop.f32.mrb[0].mxu0
    %224 = vmatprep.mubr.f32.mxu0 0.0
    %225 = vmatmul.mubr.f32.gmra.mrb[0].mxu0 %v147
    %v226 = vpop.f32.mrb[0].mxu0
    %v227 = vadd.f32 0.0, %v226
    %v228 = vpop.f32.mrb[0].mxu0
    %229 = vmatprep.mubr.f32.mxu0 0.0
    %230 = vmatmul.mubr.f32.gmra.mrb[0].mxu0 %v150
    %v231 = vpop.f32.mrb[0].mxu0
    %v232 = vadd.f32 0.0, %v231
    %v233 = vpop.f32.mrb[0].mxu0
    %234 = vmatprep.mubr.f32.mxu0 0.0
    %235 = vmatmul.mubr.f32.gmra.mrb[0].mxu0 %v153
    %v236 = vpop.f32.mrb[0].mxu0
    %v237 = vadd.f32 0.0, %v236
    %v238 = vpop.f32.mrb[0].mxu0
    %239 = vdwg.mxu0
    %v241 = vsel %vm142, %v120, 0
    %v244 = vsel %vm142, %v125, 0
    %v247 = vsel %vm142, %v130, 0
    %v250 = vsel %vm142, %v135, 0
    %252 = vmatprep.subr.mxu0 0.0
    %253 = vmatpush1.msra.mxu0 %v138
    %254 = vmatprep.subr.mxu0 0.0
    %255 = vmatpush1.msra.mxu0 %v139
    %256 = vmatprep.subr.mxu0 0.0
    %257 = vmatpush1.msra.mxu0 0.0
    %258 = vmatprep.subr.mxu0 0.0
    %259 = vmatpush1.msra.mxu0 0.0
    %260 = vmatprep.subr.mxu0 0.0
    %261 = vmatpush1.msra.mxu0 0.0
    %262 = vmatprep.subr.mxu0 0.0
    %263 = vmatpush1.msra.mxu0 0.0
    %264 = vmatprep.subr.mxu0 0.0
    %265 = vmatpush1.msra.mxu0 0.0
    %266 = vmatprep.subr.mxu0 0.0
    %267 = vmatpush1.msra.mxu0 0.0
    %268 = vmatprep.subr.mxu0 0.0
    %269 = vmatpush1.msra.mxu0 0.0
    %270 = vmatprep.subr.mxu0 0.0
    %271 = vmatpush1.msra.mxu0 0.0
    %272 = vmatprep.subr.mxu0 0.0
    %273 = vmatpush1.msra.mxu0 0.0
    %274 = vmatprep.subr.mxu0 0.0
    %275 = vmatpush1.msra.mxu0 0.0
    %276 = vmatprep.subr.mxu0 0.0
    %277 = vmatpush1.msra.mxu0 0.0
    %278 = vmatprep.subr.mxu0 0.0
    %279 = vmatpush1.msra.mxu0 0.0
    %280 = vmatprep.subr.mxu0 0.0
    %281 = vmatpush1.msra.mxu0 0.0
    %282 = vmatprep.subr.mxu0 0.0
    %283 = vmatpush1.msra.mxu0 0.0
    %284 = vmatprep.subr.mxu0 0.0
    %285 = vmatpush1.msra.mxu0 0.0
    %286 = vmatprep.subr.mxu0 0.0
    %287 = vmatpush1.msra.mxu0 0.0
    %288 = vmatprep.subr.mxu0 0.0
    %289 = vmatpush1.msra.mxu0 0.0
    %290 = vmatprep.subr.mxu0 0.0
    %291 = vmatpush1.msra.mxu0 0.0
    %292 = vmatprep.subr.mxu0 0.0
    %293 = vmatpush1.msra.mxu0 0.0
    %294 = vmatprep.subr.mxu0 0.0
    %295 = vmatpush1.msra.mxu0 0.0
    %296 = vmatprep.subr.mxu0 0.0
    %297 = vmatpush1.msra.mxu0 0.0
    %298 = vmatprep.subr.mxu0 0.0
    %299 = vmatpush1.msra.mxu0 0.0
    %300 = vmatprep.subr.mxu0 0.0
    %301 = vmatpush1.msra.mxu0 0.0
    %302 = vmatprep.subr.mxu0 0.0
    %303 = vmatpush1.msra.mxu0 0.0
    %304 = vmatprep.subr.mxu0 0.0
    %305 = vmatpush1.msra.mxu0 0.0
    %306 = vmatprep.subr.mxu0 0.0
    %307 = vmatpush1.msra.mxu0 0.0
    %308 = vmatprep.subr.mxu0 0.0
    %309 = vmatpush1.msra.mxu0 0.0
    %310 = vmatprep.subr.mxu0 0.0
    %311 = vmatpush1.msra.mxu0 0.0
    %312 = vmatprep.subr.mxu0 0.0
    %313 = vmatpush1.msra.mxu0 0.0
    %314 = vmatprep.subr.mxu0 0.0
    %315 = vmatpush1.msra.mxu0 0.0
    %316 = vmatprep.mubr.f32.mxu0 0.0
    %317 = vmatmul.mubr.f32.gmra.mrb[0].mxu0 %v241
    %v318 = vpop.f32.mrb[0].mxu0
    %v319 = vadd.f32 %v222, %v318
    %v320 = vpop.f32.mrb[0].mxu0
    %321 = vmatprep.mubr.f32.mxu0 0.0
    %322 = vmatmul.mubr.f32.gmra.mrb[0].mxu0 %v244
    %v323 = vpop.f32.mrb[0].mxu0
    %v324 = vadd.f32 %v227, %v323
    %v325 = vpop.f32.mrb[0].mxu0
    %326 = vmatprep.mubr.f32.mxu0 0.0
    %327 = vmatmul.mubr.f32.gmra.mrb[0].mxu0 %v247
    %v328 = vpop.f32.mrb[0].mxu0
    %v329 = vadd.f32 %v232, %v328
    %v330 = vpop.f32.mrb[0].mxu0
    %331 = vmatprep.mubr.f32.mxu0 0.0
    %332 = vmatmul.mubr.f32.gmra.mrb[0].mxu0 %v250
    %v333 = vpop.f32.mrb[0].mxu0
    %v334 = vadd.f32 %v237, %v333
    %v335 = vpop.f32.mrb[0].mxu0
    %336 = vdwg.mxu0
    %v337 = vld [vmem:[%s3] sm:$0x1]
    %v339 = vlaneseq
    %v340 = vshrl.u32 %v339, 7
    %v341 = vsub.s32 0, %v340
    %v342 = vrot.slane %v337, %v341
    %v344 = vadd.f32 %v319, %v342
    %v345 = vadd.f32 %v324, %v342
    %v346 = vadd.f32 %v329, %v342
    %v347 = vadd.f32 %v334, %v342
    %348 = vmatprep.subr.mxu0 0.0
    %349 = vmatpush1.msra.mxu0 %v344
    %350 = vmatprep.subr.mxu0 0.0
    %351 = vmatpush1.msra.mxu0 %v345
    %352 = vmatprep.subr.mxu0 0.0
    %353 = vmatpush1.msra.mxu0 %v346
    %354 = vmatprep.subr.mxu0 0.0
    %355 = vmatpush1.msra.mxu0 %v347
    %356 = vmatprep.subr.mxu0 0.0
    %357 = vmatpush1.msra.mxu0 0.0
    %358 = vmatprep.subr.mxu0 0.0
    %359 = vmatpush1.msra.mxu0 0.0
    %360 = vmatprep.subr.mxu0 0.0
    %361 = vmatpush1.msra.mxu0 0.0
    %362 = vmatprep.subr.mxu0 0.0
    %363 = vmatpush1.msra.mxu0 0.0
    %364 = vmatprep.subr.mxu0 0.0
    %365 = vmatpush1.msra.mxu0 0.0
    %366 = vmatprep.subr.mxu0 0.0
    %367 = vmatpush1.msra.mxu0 0.0
    %368 = vmatprep.subr.mxu0 0.0
    %369 = vmatpush1.msra.mxu0 0.0
    %370 = vmatprep.subr.mxu0 0.0
    %371 = vmatpush1.msra.mxu0 0.0
    %372 = vmatprep.subr.mxu0 0.0
    %373 = vmatpush1.msra.mxu0 0.0
    %374 = vmatprep.subr.mxu0 0.0
    %375 = vmatpush1.msra.mxu0 0.0
    %376 = vmatprep.subr.mxu0 0.0
    %377 = vmatpush1.msra.mxu0 0.0
    %378 = vmatprep.subr.mxu0 0.0
    %379 = vmatpush1.msra.mxu0 0.0
    %380 = vmatprep.subr.mxu0 0.0
    %381 = vmatpush1.msra.mxu0 0.0
    %382 = vmatprep.subr.mxu0 0.0
    %383 = vmatpush1.msra.mxu0 0.0
    %384 = vmatprep.subr.mxu0 0.0
    %385 = vmatpush1.msra.mxu0 0.0
    %386 = vmatprep.subr.mxu0 0.0
    %387 = vmatpush1.msra.mxu0 0.0
    %388 = vmatprep.subr.mxu0 0.0
    %389 = vmatpush1.msra.mxu0 0.0
    %390 = vmatprep.subr.mxu0 0.0
    %391 = vmatpush1.msra.mxu0 0.0
    %392 = vmatprep.subr.mxu0 0.0
    %393 = vmatpush1.msra.mxu0 0.0
    %394 = vmatprep.subr.mxu0 0.0
    %395 = vmatpush1.msra.mxu0 0.0
    %396 = vmatprep.subr.mxu0 0.0
    %397 = vmatpush1.msra.mxu0 0.0
    %398 = vmatprep.subr.mxu0 0.0
    %399 = vmatpush1.msra.mxu0 0.0
    %400 = vmatprep.subr.mxu0 0.0
    %401 = vmatpush1.msra.mxu0 0.0
    %402 = vmatprep.subr.mxu0 0.0
    %403 = vmatpush1.msra.mxu0 0.0
    %404 = vmatprep.subr.mxu0 0.0
    %405 = vmatpush1.msra.mxu0 0.0
    %406 = vmatprep.subr.mxu0 0.0
    %407 = vmatpush1.msra.mxu0 0.0
    %408 = vmatprep.subr.mxu0 0.0
    %409 = vmatpush1.msra.mxu0 0.0
    %410 = vmatprep.subr.mxu0 0.0
    %411 = vmatpush1.msra.mxu0 0.0
    %412 = vmatprep.mubr.f32.mxu0 0.0
    %413 = vmatmul.mubr.f32.gmra.mrb[0].mxu0 %v42
    %v414 = vpop.f32.mrb[0].mxu0
    %v415 = vadd.f32 0.0, %v414
    %v416 = vpop.f32.mrb[0].mxu0
    %417 = vmatprep.mubr.f32.mxu0 0.0
    %418 = vmatmul.mubr.f32.gmra.mrb[0].mxu0 %v45
    %v419 = vpop.f32.mrb[0].mxu0
    %v420 = vadd.f32 0.0, %v419
    %v421 = vpop.f32.mrb[0].mxu0
    %422 = vmatprep.mubr.f32.mxu0 0.0
    %423 = vmatmul.mubr.f32.gmra.mrb[0].mxu0 %v48
    %v424 = vpop.f32.mrb[0].mxu0
    %v425 = vadd.f32 0.0, %v424
    %v426 = vpop.f32.mrb[0].mxu0
    %427 = vmatprep.mubr.f32.mxu0 0.0
    %428 = vmatmul.mubr.f32.gmra.mrb[0].mxu0 %v51
    %v429 = vpop.f32.mrb[0].mxu0
    %v430 = vadd.f32 0.0, %v429
    %v431 = vpop.f32.mrb[0].mxu0
    %432 = vdwg.mxu0
    %s433 = scalar_lea.vmem [#allocation2], 256
    %v434 = vld [vmem:[%s433] sm:$0xff]
    %v435 = vld [vmem:[%s433 + $0x8] sm:$0xff]
    %v436 = vld [vmem:[%s433 + $0x10] sm:$0xff]
    %v437 = vld [vmem:[%s433 + $0x18] sm:$0xff]
    %v438 = vld [vmem:[%s433 + $0x20] sm:$0xff]
    %v439 = vld [vmem:[%s433 + $0x28] sm:$0xff]
    %v440 = vld [vmem:[%s433 + $0x30] sm:$0xff]
    %v441 = vld [vmem:[%s433 + $0x38] sm:$0xff]
    %v442 = vld [vmem:[%s433 + $0x40] sm:$0xff]
    %v443 = vld [vmem:[%s433 + $0x48] sm:$0xff]
    %v444 = vld [vmem:[%s433 + $0x50] sm:$0xff]
    %v445 = vld [vmem:[%s433 + $0x58] sm:$0xff]
    %v446 = vld [vmem:[%s433 + $0x60] sm:$0xff]
    %v447 = vld [vmem:[%s433 + $0x68] sm:$0xff]
    %v448 = vld [vmem:[%s433 + $0x70] sm:$0xff]
    %v449 = vld [vmem:[%s433 + $0x78] sm:$0xff]
    %v450 = vld [vmem:[%s433 + $0x80] sm:$0xff]
    %v451 = vld [vmem:[%s433 + $0x88] sm:$0xff]
    %v452 = vld [vmem:[%s433 + $0x90] sm:$0xff]
    %v453 = vld [vmem:[%s433 + $0x98] sm:$0xff]
    %v454 = vld [vmem:[%s433 + $0xa0] sm:$0xff]
    %v455 = vld [vmem:[%s433 + $0xa8] sm:$0xff]
    %v456 = vld [vmem:[%s433 + $0xb0] sm:$0xff]
    %v457 = vld [vmem:[%s433 + $0xb8] sm:$0xff]
    %v458 = vld [vmem:[%s433 + $0xc0] sm:$0xff]
    %v459 = vld [vmem:[%s433 + $0xc8] sm:$0xff]
    %v460 = vld [vmem:[%s433 + $0xd0] sm:$0xff]
    %v461 = vld [vmem:[%s433 + $0xd8] sm:$0xff]
    %v462 = vld [vmem:[%s433 + $0xe0] sm:$0xff]
    %v463 = vld [vmem:[%s433 + $0xe8] sm:$0xff]
    %v464 = vld [vmem:[%s433 + $0xf0] sm:$0xff]
    %v465 = vld [vmem:[%s433 + $0xf8] sm:$0xff]
    %466 = vmatprep.subr.mxu0 0.0
    %467 = vmatpush1.msra.mxu0 %v450
    %468 = vmatprep.subr.mxu0 0.0
    %469 = vmatpush1.msra.mxu0 %v451
    %470 = vmatprep.subr.mxu0 0.0
    %471 = vmatpush1.msra.mxu0 %v452
    %472 = vmatprep.subr.mxu0 0.0
    %473 = vmatpush1.msra.mxu0 %v453
    %474 = vmatprep.subr.mxu0 0.0
    %475 = vmatpush1.msra.mxu0 %v454
    %476 = vmatprep.subr.mxu0 0.0
    %477 = vmatpush1.msra.mxu0 %v455
    %478 = vmatprep.subr.mxu0 0.0
    %479 = vmatpush1.msra.mxu0 %v456
    %480 = vmatprep.subr.mxu0 0.0
    %481 = vmatpush1.msra.mxu0 %v457
    %482 = vmatprep.subr.mxu0 0.0
    %483 = vmatpush1.msra.mxu0 %v458
    %484 = vmatprep.subr.mxu0 0.0
    %485 = vmatpush1.msra.mxu0 %v459
    %486 = vmatprep.subr.mxu0 0.0
    %487 = vmatpush1.msra.mxu0 %v460
    %488 = vmatprep.subr.mxu0 0.0
    %489 = vmatpush1.msra.mxu0 %v461
    %490 = vmatprep.subr.mxu0 0.0
    %491 = vmatpush1.msra.mxu0 %v462
    %492 = vmatprep.subr.mxu0 0.0
    %493 = vmatpush1.msra.mxu0 %v463
    %494 = vmatprep.subr.mxu0 0.0
    %495 = vmatpush1.msra.mxu0 %v464
    %496 = vmatprep.subr.mxu0 0.0
    %497 = vmatpush1.msra.mxu0 %v465
    %498 = vmatprep.subr.mxu0 0.0
    %499 = vmatpush1.msra.mxu0 0.0
    %500 = vmatprep.subr.mxu0 0.0
    %501 = vmatpush1.msra.mxu0 0.0
    %502 = vmatprep.subr.mxu0 0.0
    %503 = vmatpush1.msra.mxu0 0.0
    %504 = vmatprep.subr.mxu0 0.0
    %505 = vmatpush1.msra.mxu0 0.0
    %506 = vmatprep.subr.mxu0 0.0
    %507 = vmatpush1.msra.mxu0 0.0
    %508 = vmatprep.subr.mxu0 0.0
    %509 = vmatpush1.msra.mxu0 0.0
    %510 = vmatprep.subr.mxu0 0.0
    %511 = vmatpush1.msra.mxu0 0.0
    %512 = vmatprep.subr.mxu0 0.0
    %513 = vmatpush1.msra.mxu0 0.0
    %514 = vmatprep.subr.mxu0 0.0
    %515 = vmatpush1.msra.mxu0 0.0
    %516 = vmatprep.subr.mxu0 0.0
    %517 = vmatpush1.msra.mxu0 0.0
    %518 = vmatprep.subr.mxu0 0.0
    %519 = vmatpush1.msra.mxu0 0.0
    %520 = vmatprep.subr.mxu0 0.0
    %521 = vmatpush1.msra.mxu0 0.0
    %522 = vmatprep.subr.mxu0 0.0
    %523 = vmatpush1.msra.mxu0 0.0
    %524 = vmatprep.subr.mxu0 0.0
    %525 = vmatpush1.msra.mxu0 0.0
    %526 = vmatprep.subr.mxu0 0.0
    %527 = vmatpush1.msra.mxu0 0.0
    %528 = vmatprep.subr.mxu0 0.0
    %529 = vmatpush1.msra.mxu0 0.0
    %530 = vmatprep.mubr.f32.mxu0 0.0
    %531 = vmatmul.mubr.f32.gmra.mrb[0].mxu0 %v344
    %v532 = vpop.f32.mrb[0].mxu0
    %v533 = vadd.f32 0.0, %v532
    %v534 = vpop.f32.mrb[0].mxu0
    %535 = vmatprep.mubr.f32.mxu0 0.0
    %536 = vmatmul.mubr.f32.gmra.mrb[0].mxu0 %v345
    %v537 = vpop.f32.mrb[0].mxu0
    %v538 = vadd.f32 0.0, %v537
    %v539 = vpop.f32.mrb[0].mxu0
    %540 = vmatprep.mubr.f32.mxu0 0.0
    %541 = vmatmul.mubr.f32.gmra.mrb[0].mxu0 %v346
    %v542 = vpop.f32.mrb[0].mxu0
    %v543 = vadd.f32 0.0, %v542
    %v544 = vpop.f32.mrb[0].mxu0
    %545 = vmatprep.mubr.f32.mxu0 0.0
    %546 = vmatmul.mubr.f32.gmra.mrb[0].mxu0 %v347
    %v547 = vpop.f32.mrb[0].mxu0
    %v548 = vadd.f32 0.0, %v547
    %v549 = vpop.f32.mrb[0].mxu0
    %550 = vdwg.mxu0
    %551 = vmatprep.subr.mxu0 0.0
    %552 = vmatpush1.msra.mxu0 %v434
    %553 = vmatprep.subr.mxu0 0.0
    %554 = vmatpush1.msra.mxu0 %v435
    %555 = vmatprep.subr.mxu0 0.0
    %556 = vmatpush1.msra.mxu0 %v436
    %557 = vmatprep.subr.mxu0 0.0
    %558 = vmatpush1.msra.mxu0 %v437
    %559 = vmatprep.subr.mxu0 0.0
    %560 = vmatpush1.msra.mxu0 %v438
    %561 = vmatprep.subr.mxu0 0.0
    %562 = vmatpush1.msra.mxu0 %v439
    %563 = vmatprep.subr.mxu0 0.0
    %564 = vmatpush1.msra.mxu0 %v440
    %565 = vmatprep.subr.mxu0 0.0
    %566 = vmatpush1.msra.mxu0 %v441
    %567 = vmatprep.subr.mxu0 0.0
    %568 = vmatpush1.msra.mxu0 %v442
    %569 = vmatprep.subr.mxu0 0.0
    %570 = vmatpush1.msra.mxu0 %v443
    %571 = vmatprep.subr.mxu0 0.0
    %572 = vmatpush1.msra.mxu0 %v444
    %573 = vmatprep.subr.mxu0 0.0
    %574 = vmatpush1.msra.mxu0 %v445
    %575 = vmatprep.subr.mxu0 0.0
    %576 = vmatpush1.msra.mxu0 %v446
    %577 = vmatprep.subr.mxu0 0.0
    %578 = vmatpush1.msra.mxu0 %v447
    %579 = vmatprep.subr.mxu0 0.0
    %580 = vmatpush1.msra.mxu0 %v448
    %581 = vmatprep.subr.mxu0 0.0
    %582 = vmatpush1.msra.mxu0 %v449
    %583 = vmatprep.subr.mxu0 0.0
    %584 = vmatpush1.msra.mxu0 0.0
    %585 = vmatprep.subr.mxu0 0.0
    %586 = vmatpush1.msra.mxu0 0.0
    %587 = vmatprep.subr.mxu0 0.0
    %588 = vmatpush1.msra.mxu0 0.0
    %589 = vmatprep.subr.mxu0 0.0
    %590 = vmatpush1.msra.mxu0 0.0
    %591 = vmatprep.subr.mxu0 0.0
    %592 = vmatpush1.msra.mxu0 0.0
    %593 = vmatprep.subr.mxu0 0.0
    %594 = vmatpush1.msra.mxu0 0.0
    %595 = vmatprep.subr.mxu0 0.0
    %596 = vmatpush1.msra.mxu0 0.0
    %597 = vmatprep.subr.mxu0 0.0
    %598 = vmatpush1.msra.mxu0 0.0
    %599 = vmatprep.subr.mxu0 0.0
    %600 = vmatpush1.msra.mxu0 0.0
    %601 = vmatprep.subr.mxu0 0.0
    %602 = vmatpush1.msra.mxu0 0.0
    %603 = vmatprep.subr.mxu0 0.0
    %604 = vmatpush1.msra.mxu0 0.0
    %605 = vmatprep.subr.mxu0 0.0
    %606 = vmatpush1.msra.mxu0 0.0
    %607 = vmatprep.subr.mxu0 0.0
    %608 = vmatpush1.msra.mxu0 0.0
    %609 = vmatprep.subr.mxu0 0.0
    %610 = vmatpush1.msra.mxu0 0.0
    %611 = vmatprep.subr.mxu0 0.0
    %612 = vmatpush1.msra.mxu0 0.0
    %613 = vmatprep.subr.mxu0 0.0
    %614 = vmatpush1.msra.mxu0 0.0
    %615 = vmatprep.mubr.f32.mxu0 0.0
    %616 = vmatmul.mubr.f32.gmra.mrb[0].mxu0 %v415
    %v617 = vpop.f32.mrb[0].mxu0
    %v618 = vadd.f32 %v533, %v617
    %v619 = vpop.f32.mrb[0].mxu0
    %620 = vmatprep.mubr.f32.mxu0 0.0
    %621 = vmatmul.mubr.f32.gmra.mrb[0].mxu0 %v420
    %v622 = vpop.f32.mrb[0].mxu0
    %v623 = vadd.f32 %v538, %v622
    %v624 = vpop.f32.mrb[0].mxu0
    %625 = vmatprep.mubr.f32.mxu0 0.0
    %626 = vmatmul.mubr.f32.gmra.mrb[0].mxu0 %v425
    %v627 = vpop.f32.mrb[0].mxu0
    %v628 = vadd.f32 %v543, %v627
    %v629 = vpop.f32.mrb[0].mxu0
    %630 = vmatprep.mubr.f32.mxu0 0.0
    %631 = vmatmul.mubr.f32.gmra.mrb[0].mxu0 %v430
    %v632 = vpop.f32.mrb[0].mxu0
    %v633 = vadd.f32 %v548, %v632
    %v634 = vpop.f32.mrb[0].mxu0
    %635 = vdwg.mxu0
    %s636 = scalar_lea.vmem %s3, 1
    %v637 = vld [vmem:[%s636] sm:$0x1]
    %v639 = vlaneseq
    %v640 = vshrl.u32 %v639, 7
    %v641 = vsub.s32 0, %v640
    %v642 = vrot.slane %v637, %v641
    %v644 = vadd.f32 %v618, %v642
    %v645 = vadd.f32 %v623, %v642
    %v646 = vadd.f32 %v628, %v642
    %v647 = vadd.f32 %v633, %v642
    %648 = vmatprep.subr.mxu0 0.0
    %649 = vmatpush1.msra.mxu0 %v644
    %650 = vmatprep.subr.mxu0 0.0
    %651 = vmatpush1.msra.mxu0 %v645
    %652 = vmatprep.subr.mxu0 0.0
    %653 = vmatpush1.msra.mxu0 %v646
    %654 = vmatprep.subr.mxu0 0.0
    %655 = vmatpush1.msra.mxu0 %v647
    %656 = vmatprep.subr.mxu0 0.0
    %657 = vmatpush1.msra.mxu0 0.0
    %658 = vmatprep.subr.mxu0 0.0
    %659 = vmatpush1.msra.mxu0 0.0
    %660 = vmatprep.subr.mxu0 0.0
    %661 = vmatpush1.msra.mxu0 0.0
    %662 = vmatprep.subr.mxu0 0.0
    %663 = vmatpush1.msra.mxu0 0.0
    %664 = vmatprep.subr.mxu0 0.0
    %665 = vmatpush1.msra.mxu0 0.0
    %666 = vmatprep.subr.mxu0 0.0
    %667 = vmatpush1.msra.mxu0 0.0
    %668 = vmatprep.subr.mxu0 0.0
    %669 = vmatpush1.msra.mxu0 0.0
    %670 = vmatprep.subr.mxu0 0.0
    %671 = vmatpush1.msra.mxu0 0.0
    %672 = vmatprep.subr.mxu0 0.0
    %673 = vmatpush1.msra.mxu0 0.0
    %674 = vmatprep.subr.mxu0 0.0
    %675 = vmatpush1.msra.mxu0 0.0
    %676 = vmatprep.subr.mxu0 0.0
    %677 = vmatpush1.msra.mxu0 0.0
    %678 = vmatprep.subr.mxu0 0.0
    %679 = vmatpush1.msra.mxu0 0.0
    %680 = vmatprep.subr.mxu0 0.0
    %681 = vmatpush1.msra.mxu0 0.0
    %682 = vmatprep.subr.mxu0 0.0
    %683 = vmatpush1.msra.mxu0 0.0
    %684 = vmatprep.subr.mxu0 0.0
    %685 = vmatpush1.msra.mxu0 0.0
    %686 = vmatprep.subr.mxu0 0.0
    %687 = vmatpush1.msra.mxu0 0.0
    %688 = vmatprep.subr.mxu0 0.0
    %689 = vmatpush1.msra.mxu0 0.0
    %690 = vmatprep.subr.mxu0 0.0
    %691 = vmatpush1.msra.mxu0 0.0
    %692 = vmatprep.subr.mxu0 0.0
    %693 = vmatpush1.msra.mxu0 0.0
    %694 = vmatprep.subr.mxu0 0.0
    %695 = vmatpush1.msra.mxu0 0.0
    %696 = vmatprep.subr.mxu0 0.0
    %697 = vmatpush1.msra.mxu0 0.0
    %698 = vmatprep.subr.mxu0 0.0
    %699 = vmatpush1.msra.mxu0 0.0
    %700 = vmatprep.subr.mxu0 0.0
    %701 = vmatpush1.msra.mxu0 0.0
    %702 = vmatprep.subr.mxu0 0.0
    %703 = vmatpush1.msra.mxu0 0.0
    %704 = vmatprep.subr.mxu0 0.0
    %705 = vmatpush1.msra.mxu0 0.0
    %706 = vmatprep.subr.mxu0 0.0
    %707 = vmatpush1.msra.mxu0 0.0
    %708 = vmatprep.subr.mxu0 0.0
    %709 = vmatpush1.msra.mxu0 0.0
    %710 = vmatprep.subr.mxu0 0.0
    %711 = vmatpush1.msra.mxu0 0.0
    %712 = vmatprep.mubr.f32.mxu0 0.0
    %713 = vmatmul.mubr.f32.gmra.mrb[0].mxu0 %v42
    %v714 = vpop.f32.mrb[0].mxu0
    %v715 = vadd.f32 0.0, %v714
    %v716 = vpop.f32.mrb[0].mxu0
    %717 = vmatprep.mubr.f32.mxu0 0.0
    %718 = vmatmul.mubr.f32.gmra.mrb[0].mxu0 %v45
    %v719 = vpop.f32.mrb[0].mxu0
    %v720 = vadd.f32 0.0, %v719
    %v721 = vpop.f32.mrb[0].mxu0
    %722 = vmatprep.mubr.f32.mxu0 0.0
    %723 = vmatmul.mubr.f32.gmra.mrb[0].mxu0 %v48
    %v724 = vpop.f32.mrb[0].mxu0
    %v725 = vadd.f32 0.0, %v724
    %v726 = vpop.f32.mrb[0].mxu0
    %727 = vmatprep.mubr.f32.mxu0 0.0
    %728 = vmatmul.mubr.f32.gmra.mrb[0].mxu0 %v51
    %v729 = vpop.f32.mrb[0].mxu0
    %v730 = vadd.f32 0.0, %v729
    %v731 = vpop.f32.mrb[0].mxu0
    %732 = vdwg.mxu0
    %s733 = scalar_lea.vmem [#allocation2], 512
    %v734 = vld [vmem:[%s733] sm:$0xff]
    %v735 = vld [vmem:[%s733 + $0x8] sm:$0xff]
    %v736 = vld [vmem:[%s733 + $0x10] sm:$0xff]
    %v737 = vld [vmem:[%s733 + $0x18] sm:$0xff]
    %v738 = vld [vmem:[%s733 + $0x20] sm:$0xff]
    %v739 = vld [vmem:[%s733 + $0x28] sm:$0xff]
    %v740 = vld [vmem:[%s733 + $0x30] sm:$0xff]
    %v741 = vld [vmem:[%s733 + $0x38] sm:$0xff]
    %v742 = vld [vmem:[%s733 + $0x40] sm:$0xff]
    %v743 = vld [vmem:[%s733 + $0x48] sm:$0xff]
    %v744 = vld [vmem:[%s733 + $0x50] sm:$0xff]
    %v745 = vld [vmem:[%s733 + $0x58] sm:$0xff]
    %v746 = vld [vmem:[%s733 + $0x60] sm:$0xff]
    %v747 = vld [vmem:[%s733 + $0x68] sm:$0xff]
    %v748 = vld [vmem:[%s733 + $0x70] sm:$0xff]
    %v749 = vld [vmem:[%s733 + $0x78] sm:$0xff]
    %v750 = vld [vmem:[%s733 + $0x80] sm:$0xff]
    %v751 = vld [vmem:[%s733 + $0x88] sm:$0xff]
    %v752 = vld [vmem:[%s733 + $0x90] sm:$0xff]
    %v753 = vld [vmem:[%s733 + $0x98] sm:$0xff]
    %v754 = vld [vmem:[%s733 + $0xa0] sm:$0xff]
    %v755 = vld [vmem:[%s733 + $0xa8] sm:$0xff]
    %v756 = vld [vmem:[%s733 + $0xb0] sm:$0xff]
    %v757 = vld [vmem:[%s733 + $0xb8] sm:$0xff]
    %v758 = vld [vmem:[%s733 + $0xc0] sm:$0xff]
    %v759 = vld [vmem:[%s733 + $0xc8] sm:$0xff]
    %v760 = vld [vmem:[%s733 + $0xd0] sm:$0xff]
    %v761 = vld [vmem:[%s733 + $0xd8] sm:$0xff]
    %v762 = vld [vmem:[%s733 + $0xe0] sm:$0xff]
    %v763 = vld [vmem:[%s733 + $0xe8] sm:$0xff]
    %v764 = vld [vmem:[%s733 + $0xf0] sm:$0xff]
    %v765 = vld [vmem:[%s733 + $0xf8] sm:$0xff]
    %766 = vmatprep.subr.mxu0 0.0
    %767 = vmatpush1.msra.mxu0 %v750
    %768 = vmatprep.subr.mxu0 0.0
    %769 = vmatpush1.msra.mxu0 %v751
    %770 = vmatprep.subr.mxu0 0.0
    %771 = vmatpush1.msra.mxu0 %v752
    %772 = vmatprep.subr.mxu0 0.0
    %773 = vmatpush1.msra.mxu0 %v753
    %774 = vmatprep.subr.mxu0 0.0
    %775 = vmatpush1.msra.mxu0 %v754
    %776 = vmatprep.subr.mxu0 0.0
    %777 = vmatpush1.msra.mxu0 %v755
    %778 = vmatprep.subr.mxu0 0.0
    %779 = vmatpush1.msra.mxu0 %v756
    %780 = vmatprep.subr.mxu0 0.0
    %781 = vmatpush1.msra.mxu0 %v757
    %782 = vmatprep.subr.mxu0 0.0
    %783 = vmatpush1.msra.mxu0 %v758
    %784 = vmatprep.subr.mxu0 0.0
    %785 = vmatpush1.msra.mxu0 %v759
    %786 = vmatprep.subr.mxu0 0.0
    %787 = vmatpush1.msra.mxu0 %v760
    %788 = vmatprep.subr.mxu0 0.0
    %789 = vmatpush1.msra.mxu0 %v761
    %790 = vmatprep.subr.mxu0 0.0
    %791 = vmatpush1.msra.mxu0 %v762
    %792 = vmatprep.subr.mxu0 0.0
    %793 = vmatpush1.msra.mxu0 %v763
    %794 = vmatprep.subr.mxu0 0.0
    %795 = vmatpush1.msra.mxu0 %v764
    %796 = vmatprep.subr.mxu0 0.0
    %797 = vmatpush1.msra.mxu0 %v765
    %798 = vmatprep.subr.mxu0 0.0
    %799 = vmatpush1.msra.mxu0 0.0
    %800 = vmatprep.subr.mxu0 0.0
    %801 = vmatpush1.msra.mxu0 0.0
    %802 = vmatprep.subr.mxu0 0.0
    %803 = vmatpush1.msra.mxu0 0.0
    %804 = vmatprep.subr.mxu0 0.0
    %805 = vmatpush1.msra.mxu0 0.0
    %806 = vmatprep.subr.mxu0 0.0
    %807 = vmatpush1.msra.mxu0 0.0
    %808 = vmatprep.subr.mxu0 0.0
    %809 = vmatpush1.msra.mxu0 0.0
    %810 = vmatprep.subr.mxu0 0.0
    %811 = vmatpush1.msra.mxu0 0.0
    %812 = vmatprep.subr.mxu0 0.0
    %813 = vmatpush1.msra.mxu0 0.0
    %814 = vmatprep.subr.mxu0 0.0
    %815 = vmatpush1.msra.mxu0 0.0
    %816 = vmatprep.subr.mxu0 0.0
    %817 = vmatpush1.msra.mxu0 0.0
    %818 = vmatprep.subr.mxu0 0.0
    %819 = vmatpush1.msra.mxu0 0.0
    %820 = vmatprep.subr.mxu0 0.0
    %821 = vmatpush1.msra.mxu0 0.0
    %822 = vmatprep.subr.mxu0 0.0
    %823 = vmatpush1.msra.mxu0 0.0
    %824 = vmatprep.subr.mxu0 0.0
    %825 = vmatpush1.msra.mxu0 0.0
    %826 = vmatprep.subr.mxu0 0.0
    %827 = vmatpush1.msra.mxu0 0.0
    %828 = vmatprep.subr.mxu0 0.0
    %829 = vmatpush1.msra.mxu0 0.0
    %830 = vmatprep.mubr.f32.mxu0 0.0
    %831 = vmatmul.mubr.f32.gmra.mrb[0].mxu0 %v644
    %v832 = vpop.f32.mrb[0].mxu0
    %v833 = vadd.f32 0.0, %v832
    %v834 = vpop.f32.mrb[0].mxu0
    %835 = vmatprep.mubr.f32.mxu0 0.0
    %836 = vmatmul.mubr.f32.gmra.mrb[0].mxu0 %v645
    %v837 = vpop.f32.mrb[0].mxu0
    %v838 = vadd.f32 0.0, %v837
    %v839 = vpop.f32.mrb[0].mxu0
    %840 = vmatprep.mubr.f32.mxu0 0.0
    %841 = vmatmul.mubr.f32.gmra.mrb[0].mxu0 %v646
    %v842 = vpop.f32.mrb[0].mxu0
    %v843 = vadd.f32 0.0, %v842
    %v844 = vpop.f32.mrb[0].mxu0
    %845 = vmatprep.mubr.f32.mxu0 0.0
    %846 = vmatmul.mubr.f32.gmra.mrb[0].mxu0 %v647
    %v847 = vpop.f32.mrb[0].mxu0
    %v848 = vadd.f32 0.0, %v847
    %v849 = vpop.f32.mrb[0].mxu0
    %850 = vdwg.mxu0
    %851 = vmatprep.subr.mxu0 0.0
    %852 = vmatpush1.msra.mxu0 %v734
    %853 = vmatprep.subr.mxu0 0.0
    %854 = vmatpush1.msra.mxu0 %v735
    %855 = vmatprep.subr.mxu0 0.0
    %856 = vmatpush1.msra.mxu0 %v736
    %857 = vmatprep.subr.mxu0 0.0
    %858 = vmatpush1.msra.mxu0 %v737
    %859 = vmatprep.subr.mxu0 0.0
    %860 = vmatpush1.msra.mxu0 %v738
    %861 = vmatprep.subr.mxu0 0.0
    %862 = vmatpush1.msra.mxu0 %v739
    %863 = vmatprep.subr.mxu0 0.0
    %864 = vmatpush1.msra.mxu0 %v740
    %865 = vmatprep.subr.mxu0 0.0
    %866 = vmatpush1.msra.mxu0 %v741
    %867 = vmatprep.subr.mxu0 0.0
    %868 = vmatpush1.msra.mxu0 %v742
    %869 = vmatprep.subr.mxu0 0.0
    %870 = vmatpush1.msra.mxu0 %v743
    %871 = vmatprep.subr.mxu0 0.0
    %872 = vmatpush1.msra.mxu0 %v744
    %873 = vmatprep.subr.mxu0 0.0
    %874 = vmatpush1.msra.mxu0 %v745
    %875 = vmatprep.subr.mxu0 0.0
    %876 = vmatpush1.msra.mxu0 %v746
    %877 = vmatprep.subr.mxu0 0.0
    %878 = vmatpush1.msra.mxu0 %v747
    %879 = vmatprep.subr.mxu0 0.0
    %880 = vmatpush1.msra.mxu0 %v748
    %881 = vmatprep.subr.mxu0 0.0
    %882 = vmatpush1.msra.mxu0 %v749
    %883 = vmatprep.subr.mxu0 0.0
    %884 = vmatpush1.msra.mxu0 0.0
    %885 = vmatprep.subr.mxu0 0.0
    %886 = vmatpush1.msra.mxu0 0.0
    %887 = vmatprep.subr.mxu0 0.0
    %888 = vmatpush1.msra.mxu0 0.0
    %889 = vmatprep.subr.mxu0 0.0
    %890 = vmatpush1.msra.mxu0 0.0
    %891 = vmatprep.subr.mxu0 0.0
    %892 = vmatpush1.msra.mxu0 0.0
    %893 = vmatprep.subr.mxu0 0.0
    %894 = vmatpush1.msra.mxu0 0.0
    %895 = vmatprep.subr.mxu0 0.0
    %896 = vmatpush1.msra.mxu0 0.0
    %897 = vmatprep.subr.mxu0 0.0
    %898 = vmatpush1.msra.mxu0 0.0
    %899 = vmatprep.subr.mxu0 0.0
    %900 = vmatpush1.msra.mxu0 0.0
    %901 = vmatprep.subr.mxu0 0.0
    %902 = vmatpush1.msra.mxu0 0.0
    %903 = vmatprep.subr.mxu0 0.0
    %904 = vmatpush1.msra.mxu0 0.0
    %905 = vmatprep.subr.mxu0 0.0
    %906 = vmatpush1.msra.mxu0 0.0
    %907 = vmatprep.subr.mxu0 0.0
    %908 = vmatpush1.msra.mxu0 0.0
    %909 = vmatprep.subr.mxu0 0.0
    %910 = vmatpush1.msra.mxu0 0.0
    %911 = vmatprep.subr.mxu0 0.0
    %912 = vmatpush1.msra.mxu0 0.0
    %913 = vmatprep.subr.mxu0 0.0
    %914 = vmatpush1.msra.mxu0 0.0
    %915 = vmatprep.mubr.f32.mxu0 0.0
    %916 = vmatmul.mubr.f32.gmra.mrb[0].mxu0 %v715
    %v917 = vpop.f32.mrb[0].mxu0
    %v918 = vadd.f32 %v833, %v917
    %v919 = vpop.f32.mrb[0].mxu0
    %920 = vmatprep.mubr.f32.mxu0 0.0
    %921 = vmatmul.mubr.f32.gmra.mrb[0].mxu0 %v720
    %v922 = vpop.f32.mrb[0].mxu0
    %v923 = vadd.f32 %v838, %v922
    %v924 = vpop.f32.mrb[0].mxu0
    %925 = vmatprep.mubr.f32.mxu0 0.0
    %926 = vmatmul.mubr.f32.gmra.mrb[0].mxu0 %v725
    %v927 = vpop.f32.mrb[0].mxu0
    %v928 = vadd.f32 %v843, %v927
    %v929 = vpop.f32.mrb[0].mxu0
    %930 = vmatprep.mubr.f32.mxu0 0.0
    %931 = vmatmul.mubr.f32.gmra.mrb[0].mxu0 %v730
    %v932 = vpop.f32.mrb[0].mxu0
    %v933 = vadd.f32 %v848, %v932
    %v934 = vpop.f32.mrb[0].mxu0
    %935 = vdwg.mxu0
    %s936 = scalar_lea.vmem %s3, 2
    %v937 = vld [vmem:[%s936] sm:$0x1]
    %v939 = vlaneseq
    %v940 = vshrl.u32 %v939, 7
    %v941 = vsub.s32 0, %v940
    %v942 = vrot.slane %v937, %v941
    %v944 = vadd.f32 %v918, %v942
    %v945 = vadd.f32 %v923, %v942
    %v946 = vadd.f32 %v928, %v942
    %v947 = vadd.f32 %v933, %v942
    %v948 = vlaneseq
    %v949 = vand.u32 %v948, 127
    %vm950 = vcmp.lt.s32.totalorder %v949, 8
    %v951 = vsel %vm950, %v944, -inf
    %v952 = vsel %vm950, %v945, -inf
    %v953 = vsel %vm950, %v946, -inf
    %v954 = vsel %vm950, %v947, -inf
    %955 = vmax.xlane.f32.xlu0 %v951
    %v956 = vpop.xlane.xlu0 %955
    %957 = vmax.xlane.f32.xlu0 %v952
    %v958 = vpop.xlane.xlu0 %957
    %959 = vmax.xlane.f32.xlu0 %v953
    %v960 = vpop.xlane.xlu0 %959
    %961 = vmax.xlane.f32.xlu0 %v954
    %v962 = vpop.xlane.xlu0 %961
    %v963 = vsub.f32 %v951, %v956
    %v964 = vsub.f32 %v952, %v958
    %v965 = vsub.f32 %v953, %v960
    %v966 = vsub.f32 %v954, %v962
    %v967 = vmul.f32 %v963, 1.442695
    %v968 = vpow.pop %v967
    %v969 = vmul.f32 %v964, 1.442695
    %v970 = vpow.pop %v969
    %v971 = vmul.f32 %v965, 1.442695
    %v972 = vpow.pop %v971
    %v973 = vmul.f32 %v966, 1.442695
    %v974 = vpow.pop %v973
    %975 = vadd.xlane.f32.xlu0 %v968
    %v976 = vpop.xlane.xlu0 %975
    %977 = vadd.xlane.f32.xlu0 %v970
    %v978 = vpop.xlane.xlu0 %977
    %979 = vadd.xlane.f32.xlu0 %v972
    %v980 = vpop.xlane.xlu0 %979
    %981 = vadd.xlane.f32.xlu0 %v974
    %v982 = vpop.xlane.xlu0 %981
    %v983 = vlog2.pop %v976
    %v984 = vmul.f32 %v983, 0.6931472
    %v985 = vlog2.pop %v978
    %v986 = vmul.f32 %v985, 0.6931472
    %v987 = vlog2.pop %v980
    %v988 = vmul.f32 %v987, 0.6931472
    %v989 = vlog2.pop %v982
    %v990 = vmul.f32 %v989, 0.6931472
    %v991 = vsub.f32 %v944, %v956
    %v992 = vsub.f32 %v945, %v958
    %v993 = vsub.f32 %v946, %v960
    %v994 = vsub.f32 %v947, %v962
    %v995 = vsub.f32 %v991, %v984
    %v996 = vsub.f32 %v992, %v986
    %v997 = vsub.f32 %v993, %v988
    %v998 = vsub.f32 %v994, %v990
    %999 = vst [vmem:[#allocation5] sm:$0xff] %v995
    %1000 = vst [vmem:[#allocation5 + $0x8] sm:$0xff] %v996
    %1001 = vst [vmem:[#allocation5 + $0x10] sm:$0xff] %v997
    %1002 = vst [vmem:[#allocation5 + $0x18] sm:$0xff] %v998
    // Predicated region
    $region22: #{tpu_custom_call.1} parent=1 // pred_check
      _
    $region23: #{tpu_custom_call.1} parent=1 // pred_check_branch
      %1004 = sbr.rel (0) target = $region25
    $region24: #{tpu_custom_call.1} parent=1 // pred_region
      %s1006 = ssub.s32 512, 512
      %1007 = vsyncadd [#allocation4], %s1006
      %s1008 = sshll.u32 [#allocation5], 4
      %s1009 = int_to_ptr.vmem [resolvable:$true] %s1008
      %1014 = dma.vmem_to_hbm [thread:$0]  %s1009, 512, %s4, [#allocation4], 128, 128, 8
    $region25: #{tpu_custom_call.1} parent=1 // pred_fallthru
      _
    // Predicated region
    $region26: #{tpu_custom_call.1} parent=1 // pred_check
      _
    $region27: #{tpu_custom_call.1} parent=1 // pred_check_branch
      %1016 = sbr.rel (0) target = $region29
    $region28: #{tpu_custom_call.1} parent=1 // pred_region
      %1017 = dma.done [#allocation4], 512
    $region29: #{tpu_custom_call.1} parent=1 // pred_fallthru
      _
    %1018 = vsyncpa [#allocation3], 1
    %1019 = vsyncpa [#allocation4], 1

</llo_original>
